<compile_context>
chip_gen: v7x
topology: tpu7x:2x2x1
jax: 0.10.0
libtpu: 0.0.40
codegen_flags: <defaults>
</compile_context>

<pallas_src>
import jax
import jax.numpy as jnp
from jax.experimental import pallas as pl
from jax.experimental.pallas import tpu as pltpu

LN_EPS = 1e-5  # PyTorch nn.LayerNorm default


def _round_up(x, m):
    return (x + m - 1) // m * m


def _cdiv(a, b):
    return -(-a // b)


def _layernorm(x, gamma, beta):
    # Two independent lane reductions (XLU) instead of the dependent
    # mu -> (x-mu)^2 -> mean chain; var = E[x^2] - mu^2.
    n = x.shape[-1]
    inv_n = 1.0 / n
    mu = jnp.sum(x, axis=-1, keepdims=True) * inv_n
    ms = jnp.sum(x * x, axis=-1, keepdims=True) * inv_n
    var = jnp.maximum(ms - mu * mu, 0.0)  # guard tiny negative from cancellation
    return (x - mu) * jax.lax.rsqrt(var + LN_EPS) * gamma + beta


def autoloss_kernel(x_ref, w1_ref, g1_ref, b1_ref, w2_ref, g2_ref, b2_ref, o_ref):
    x = x_ref[...].astype(jnp.float32)   # (tm, 4): cols 0:2 = pred, 2:4 = gt
    w1 = w1_ref[...]                     # (2, 64)
    gamma1 = g1_ref[...]                 # (1, 64)
    beta1 = b1_ref[...]                  # (1, 64)
    w2 = w2_ref[...]                     # (64, 128)
    gamma2 = g2_ref[...]                 # (1, 128)
    beta2 = b2_ref[...]                  # (1, 128)

    tm = x.shape[0]

    # Stack pred rows and gt rows along the sublane (batch) axis so both
    # branches share one LN/ReLU pipeline and a single MXU matmul.
    x2 = jnp.concatenate([x[:, 0:2], x[:, 2:4]], axis=0)            # (2*tm, 2)

    # K=2 first layer as a VPU broadcast-FMA (MXU would be wasted here).
    h = x2[:, 0:1] * w1[0:1, :] + x2[:, 1:2] * w1[1:2, :]            # (2*tm, 64)
    h = _layernorm(h, gamma1, beta1)
    h = jnp.maximum(h, 0.0)

    y = jnp.dot(h, w2, preferred_element_type=jnp.float32)           # (2*tm, 128) MXU
    y = _layernorm(y, gamma2, beta2)

    # Lane-dense (tm, 256) output row: [pred result | gt result].
    o_ref[:, 0:128] = y[:tm, :].astype(o_ref.dtype)
    o_ref[:, 128:256] = y[tm:, :].astype(o_ref.dtype)


def autoloss_pallas(pred, gt, params, tm=2048, out_dtype=jnp.float32):
    """Reproduces AutoLoss.forward(pred, gt) -> (b, 2, 128)."""
    w1, g1, b1, w2, g2, b2 = params
    b = pred.shape[0]
    p = pred.reshape(b, -1)
    g = gt.reshape(b, -1)
    assert p.shape[-1] == 2, "Linear(2,64) requires flattened per-sample size of 2"

    # Single (b, 4) input: halves input DMA descriptors and lane-padded VMEM.
    x = jnp.concatenate([p, g], axis=1).astype(jnp.float32)

    # Tile: multiple of 8 (f32 sublane); clamp so the grid has >=2 steps when
    # the batch allows it (keeps both v7x TensorCores busy via "parallel").
    tm = max(8, min(_round_up(tm, 8), _round_up(_cdiv(b, 2), 8)))
    grid = (_cdiv(b, tm),)  # ragged last block is masked by Pallas

    row_spec = pl.BlockSpec((tm, 4), lambda i: (i, 0))
    resident = lambda shape: pl.BlockSpec(shape, lambda i: (0, 0))

    out_bytes = jnp.dtype(out_dtype).itemsize
    param_bytes = 4 * (w1.size + w2.size + g1.size + b1.size + g2.size + b2.size)
    n_rows = 2 * b
    cost = pl.CostEstimate(
        flops=2 * n_rows * (2 * 64 + 64 * 128),
        transcendentals=2 * n_rows,  # one rsqrt per LN per row
        bytes_accessed=4 * x.size + out_bytes * b * 256 + param_bytes,
    )

    out = pl.pallas_call(
        autoloss_kernel,
        out_shape=jax.ShapeDtypeStruct((b, 256), out_dtype),
        grid=grid,
        in_specs=[
            row_spec,                    # x      (tm, 4) tile  [pred | gt]
            resident(w1.shape),          # w1     (2, 64)   resident
            resident(g1.shape),          # gamma1 (1, 64)
            resident(b1.shape),          # beta1  (1, 64)
            resident(w2.shape),          # w2     (64, 128)
            resident(g2.shape),          # gamma2 (1, 128)
            resident(b2.shape),          # beta2  (1, 128)
        ],
        out_specs=pl.BlockSpec((tm, 256), lambda i: (i, 0)),
        compiler_params=pltpu.CompilerParams(
            dimension_semantics=("parallel",),   # v7x: shard batch over 2 TCs
            vmem_limit_bytes=32 << 20,
        ),
        cost_estimate=cost,
    )(x, w1, g1, b1, w2, g2, b2)

    # (b, 256) -> free row-major view to (b, 2, 128): [:,0,:]=pred, [:,1,:]=gt
    return out.reshape(b, 2, 128)


def autoloss_ref(pred, gt, params):
    """Pure-JAX reference mirroring the PyTorch module."""
    w1, g1, b1, w2, g2, b2 = params
    b = pred.shape[0]
    comb = jnp.stack([pred.reshape(b, -1), gt.reshape(b, -1)], axis=1)
    h = comb.astype(jnp.float32) @ w1
    mu = jnp.mean(h, axis=-1, keepdims=True)
    var = jnp.mean((h - mu) ** 2, axis=-1, keepdims=True)
    h = (h - mu) * jax.lax.rsqrt(var + LN_EPS) * g1[0] + b1[0]
    h = jnp.maximum(h, 0.0)
    y = h @ w2
    mu = jnp.mean(y, axis=-1, keepdims=True)
    var = jnp.mean((y - mu) ** 2, axis=-1, keepdims=True)
    return (y - mu) * jax.lax.rsqrt(var + LN_EPS) * g2[0] + b2[0]


def make_params(key):
    k1, k2 = jax.random.split(key, 2)
    # nn.Linear(2, 64, bias=False): weight (64, 2) -> pass transposed (2, 64)
    w1 = jax.random.uniform(k1, (2, 64), jnp.float32, -1.0, 1.0) / jnp.sqrt(2.0)
    # nn.Linear(64, 128, bias=False): weight (128, 64) -> transposed (64, 128)
    w2 = jax.random.uniform(k2, (64, 128), jnp.float32, -1.0, 1.0) / jnp.sqrt(64.0)
    # LayerNorm default init: gamma=1, beta=0
    g1 = jnp.ones((1, 64), jnp.float32)
    b1 = jnp.zeros((1, 64), jnp.float32)
    g2 = jnp.ones((1, 128), jnp.float32)
    b2 = jnp.zeros((1, 128), jnp.float32)
    return (w1, g1, b1, w2, g2, b2)


if __name__ == "__main__":
    key = jax.random.PRNGKey(0)
    kp, kg, kw = jax.random.split(key, 3)
    params = make_params(kw)

    # pred/gt per-sample must flatten to 2 elements for Linear(2, 64) to apply.
    batch = 8
    pred = jax.random.normal(kp, (batch, 2), jnp.float32)
    gt = jax.random.normal(kg, (batch, 2), jnp.float32)

    out = jax.block_until_ready(autoloss_pallas(pred, gt, params))
    ref = autoloss_ref(pred, gt, params)
    assert out.shape == (batch, 2, 128), out.shape
    assert jnp.allclose(out, ref, atol=1e-4, rtol=1e-4), float(jnp.max(jnp.abs(out - ref)))

    # Second check: non-multiple batch + small tile to exercise the ragged
    # (masked) last block and the multi-step grid.
    batch2 = 37
    pred2 = jax.random.normal(kp, (batch2, 2), jnp.float32)
    gt2 = jax.random.normal(kg, (batch2, 2), jnp.float32)
    out2 = jax.block_until_ready(autoloss_pallas(pred2, gt2, params, tm=16))
    ref2 = autoloss_ref(pred2, gt2, params)
    assert out2.shape == (batch2, 2, 128), out2.shape
    assert jnp.allclose(out2, ref2, atol=1e-4, rtol=1e-4), float(jnp.max(jnp.abs(out2 - ref2)))

    print("KERNEL_OK")
</pallas_src>

<mosaic_0001>
module attributes {stable_mosaic.version = 11 : i64} {
  func.func @autoloss_kernel(%arg0: i32, %arg1: memref<8x4xf32, #tpu.memory_space<vmem>>, %arg2: memref<2x64xf32, #tpu.memory_space<vmem>>, %arg3: memref<1x64xf32, #tpu.memory_space<vmem>>, %arg4: memref<1x64xf32, #tpu.memory_space<vmem>>, %arg5: memref<64x128xf32, #tpu.memory_space<vmem>>, %arg6: memref<1x128xf32, #tpu.memory_space<vmem>>, %arg7: memref<1x128xf32, #tpu.memory_space<vmem>>, %arg8: memref<8x256xf32, #tpu.memory_space<vmem>>) attributes {dimension_semantics = [#tpu.dimension_semantics<parallel>], iteration_bounds = array<i64: 1>, scalar_prefetch = 0 : i64, scratch_operands = 0 : i64, tpu.core_type = #tpu.core_type<tc>, window_params = [{transform_indices = @transform_0, window_bounds = array<i64: 8, 4>}, {pipeline_mode = #tpu.pipeline_mode<synchronous>, transform_indices = @transform_1, window_bounds = array<i64: 2, 64>}, {pipeline_mode = #tpu.pipeline_mode<synchronous>, transform_indices = @transform_2, window_bounds = array<i64: 1, 64>}, {pipeline_mode = #tpu.pipeline_mode<synchronous>, transform_indices = @transform_3, window_bounds = array<i64: 1, 64>}, {pipeline_mode = #tpu.pipeline_mode<synchronous>, transform_indices = @transform_4, window_bounds = array<i64: 64, 128>}, {pipeline_mode = #tpu.pipeline_mode<synchronous>, transform_indices = @transform_5, window_bounds = array<i64: 1, 128>}, {pipeline_mode = #tpu.pipeline_mode<synchronous>, transform_indices = @transform_6, window_bounds = array<i64: 1, 128>}, {transform_indices = @transform_7, window_bounds = array<i64: 8, 256>}]} {
    %c0 = arith.constant 0 : index
    %c0_0 = arith.constant 0 : index
    %0 = vector.load %arg1[%c0, %c0_0] : memref<8x4xf32, #tpu.memory_space<vmem>>, vector<8x4xf32>
    %c0_1 = arith.constant 0 : index
    %c0_2 = arith.constant 0 : index
    %1 = vector.load %arg2[%c0_1, %c0_2] : memref<2x64xf32, #tpu.memory_space<vmem>>, vector<2x64xf32>
    %c0_3 = arith.constant 0 : index
    %c0_4 = arith.constant 0 : index
    %2 = vector.load %arg3[%c0_3, %c0_4] : memref<1x64xf32, #tpu.memory_space<vmem>>, vector<1x64xf32>
    %c0_5 = arith.constant 0 : index
    %c0_6 = arith.constant 0 : index
    %3 = vector.load %arg4[%c0_5, %c0_6] : memref<1x64xf32, #tpu.memory_space<vmem>>, vector<1x64xf32>
    %c0_7 = arith.constant 0 : index
    %c0_8 = arith.constant 0 : index
    %4 = vector.load %arg5[%c0_7, %c0_8] : memref<64x128xf32, #tpu.memory_space<vmem>>, vector<64x128xf32>
    %c0_9 = arith.constant 0 : index
    %c0_10 = arith.constant 0 : index
    %5 = vector.load %arg6[%c0_9, %c0_10] : memref<1x128xf32, #tpu.memory_space<vmem>>, vector<1x128xf32>
    %c0_11 = arith.constant 0 : index
    %c0_12 = arith.constant 0 : index
    %6 = vector.load %arg7[%c0_11, %c0_12] : memref<1x128xf32, #tpu.memory_space<vmem>>, vector<1x128xf32>
    %7 = vector.extract_strided_slice %0 {offsets = [0, 0], sizes = [8, 2], strides = [1, 1]} : vector<8x4xf32> to vector<8x2xf32>
    %8 = vector.extract_strided_slice %0 {offsets = [0, 2], sizes = [8, 2], strides = [1, 1]} : vector<8x4xf32> to vector<8x2xf32>
    %9 = tpu.concatenate %7, %8 in 0 : vector<8x2xf32>, vector<8x2xf32> -> vector<16x2xf32>
    %10 = vector.extract_strided_slice %9 {offsets = [0, 0], sizes = [16, 1], strides = [1, 1]} : vector<16x2xf32> to vector<16x1xf32>
    %11 = vector.extract_strided_slice %1 {offsets = [0, 0], sizes = [1, 64], strides = [1, 1]} : vector<2x64xf32> to vector<1x64xf32>
    %12 = vector.broadcast %10 : vector<16x1xf32> to vector<16x64xf32>
    %13 = vector.broadcast %11 : vector<1x64xf32> to vector<16x64xf32>
    %14 = arith.mulf %12, %13 : vector<16x64xf32>
    %15 = vector.extract_strided_slice %9 {offsets = [0, 1], sizes = [16, 1], strides = [1, 1]} : vector<16x2xf32> to vector<16x1xf32>
    %16 = vector.extract_strided_slice %1 {offsets = [1, 0], sizes = [1, 64], strides = [1, 1]} : vector<2x64xf32> to vector<1x64xf32>
    %17 = vector.broadcast %15 : vector<16x1xf32> to vector<16x64xf32>
    %18 = vector.broadcast %16 : vector<1x64xf32> to vector<16x64xf32>
    %19 = arith.mulf %17, %18 : vector<16x64xf32>
    %20 = arith.addf %14, %19 : vector<16x64xf32>
    %cst = arith.constant dense<0.000000e+00> : vector<16xf32>
    %21 = vector.multi_reduction <add>, %20, %cst [1] : vector<16x64xf32> to vector<16xf32>
    %22 = vector.shape_cast %21 : vector<16xf32> to vector<16x1xf32>
    %cst_13 = arith.constant 1.562500e-02 : f32
    %23 = vector.broadcast %cst_13 : f32 to vector<16x1xf32>
    %24 = arith.mulf %22, %23 : vector<16x1xf32>
    %25 = arith.mulf %20, %20 : vector<16x64xf32>
    %cst_14 = arith.constant dense<0.000000e+00> : vector<16xf32>
    %26 = vector.multi_reduction <add>, %25, %cst_14 [1] : vector<16x64xf32> to vector<16xf32>
    %27 = vector.shape_cast %26 : vector<16xf32> to vector<16x1xf32>
    %cst_15 = arith.constant 1.562500e-02 : f32
    %28 = vector.broadcast %cst_15 : f32 to vector<16x1xf32>
    %29 = arith.mulf %27, %28 : vector<16x1xf32>
    %30 = arith.mulf %24, %24 : vector<16x1xf32>
    %31 = arith.subf %29, %30 : vector<16x1xf32>
    %cst_16 = arith.constant 0.000000e+00 : f32
    %32 = vector.broadcast %cst_16 : f32 to vector<16x1xf32>
    %33 = arith.maximumf %31, %32 : vector<16x1xf32>
    %34 = vector.broadcast %24 : vector<16x1xf32> to vector<16x64xf32>
    %35 = arith.subf %20, %34 : vector<16x64xf32>
    %cst_17 = arith.constant 9.99999974E-6 : f32
    %36 = vector.broadcast %cst_17 : f32 to vector<16x1xf32>
    %37 = arith.addf %33, %36 : vector<16x1xf32>
    %38 = math.rsqrt %37 : vector<16x1xf32>
    %39 = vector.broadcast %38 : vector<16x1xf32> to vector<16x64xf32>
    %40 = arith.mulf %35, %39 : vector<16x64xf32>
    %41 = vector.broadcast %2 : vector<1x64xf32> to vector<16x64xf32>
    %42 = arith.mulf %40, %41 : vector<16x64xf32>
    %43 = vector.broadcast %3 : vector<1x64xf32> to vector<16x64xf32>
    %44 = arith.addf %42, %43 : vector<16x64xf32>
    %cst_18 = arith.constant 0.000000e+00 : f32
    %45 = vector.broadcast %cst_18 : f32 to vector<16x64xf32>
    %46 = arith.maximumf %44, %45 : vector<16x64xf32>
    %cst_19 = arith.constant dense<0.000000e+00> : vector<16x128xf32>
    %47 = tpu.matmul %46, %4, %cst_19 {dimension_numbers = #tpu.dot_dimension_numbers<[1], [0], [0], [1], [0, 0, 1, 1], [], []>} : vector<16x64xf32>, vector<64x128xf32>, vector<16x128xf32> -> vector<16x128xf32>
    %cst_20 = arith.constant dense<0.000000e+00> : vector<16xf32>
    %48 = vector.multi_reduction <add>, %47, %cst_20 [1] : vector<16x128xf32> to vector<16xf32>
    %49 = vector.shape_cast %48 : vector<16xf32> to vector<16x1xf32>
    %cst_21 = arith.constant 7.812500e-03 : f32
    %50 = vector.broadcast %cst_21 : f32 to vector<16x1xf32>
    %51 = arith.mulf %49, %50 : vector<16x1xf32>
    %52 = arith.mulf %47, %47 : vector<16x128xf32>
    %cst_22 = arith.constant dense<0.000000e+00> : vector<16xf32>
    %53 = vector.multi_reduction <add>, %52, %cst_22 [1] : vector<16x128xf32> to vector<16xf32>
    %54 = vector.shape_cast %53 : vector<16xf32> to vector<16x1xf32>
    %cst_23 = arith.constant 7.812500e-03 : f32
    %55 = vector.broadcast %cst_23 : f32 to vector<16x1xf32>
    %56 = arith.mulf %54, %55 : vector<16x1xf32>
    %57 = arith.mulf %51, %51 : vector<16x1xf32>
    %58 = arith.subf %56, %57 : vector<16x1xf32>
    %cst_24 = arith.constant 0.000000e+00 : f32
    %59 = vector.broadcast %cst_24 : f32 to vector<16x1xf32>
    %60 = arith.maximumf %58, %59 : vector<16x1xf32>
    %61 = vector.broadcast %51 : vector<16x1xf32> to vector<16x128xf32>
    %62 = arith.subf %47, %61 : vector<16x128xf32>
    %cst_25 = arith.constant 9.99999974E-6 : f32
    %63 = vector.broadcast %cst_25 : f32 to vector<16x1xf32>
    %64 = arith.addf %60, %63 : vector<16x1xf32>
    %65 = math.rsqrt %64 : vector<16x1xf32>
    %66 = vector.broadcast %65 : vector<16x1xf32> to vector<16x128xf32>
    %67 = arith.mulf %62, %66 : vector<16x128xf32>
    %68 = vector.broadcast %5 : vector<1x128xf32> to vector<16x128xf32>
    %69 = arith.mulf %67, %68 : vector<16x128xf32>
    %70 = vector.broadcast %6 : vector<1x128xf32> to vector<16x128xf32>
    %71 = arith.addf %69, %70 : vector<16x128xf32>
    %72 = vector.extract_strided_slice %71 {offsets = [0, 0], sizes = [8, 128], strides = [1, 1]} : vector<16x128xf32> to vector<8x128xf32>
    %c0_26 = arith.constant 0 : index
    %c0_27 = arith.constant 0 : index
    %73 = vector.load %arg8[%c0_26, %c0_27] : memref<8x256xf32, #tpu.memory_space<vmem>>, vector<8x128xf32>
    tpu.vector_store %arg8[%c0_26, %c0_27], %72 {strides = array<i32>} : memref<8x256xf32, #tpu.memory_space<vmem>>, vector<8x128xf32>,
    %74 = vector.extract_strided_slice %71 {offsets = [8, 0], sizes = [8, 128], strides = [1, 1]} : vector<16x128xf32> to vector<8x128xf32>
    %c0_28 = arith.constant 0 : index
    %c128 = arith.constant 128 : index
    %75 = vector.load %arg8[%c0_28, %c128] : memref<8x256xf32, #tpu.memory_space<vmem>>, vector<8x128xf32>
    tpu.vector_store %arg8[%c0_28, %c128], %74 {strides = array<i32>} : memref<8x256xf32, #tpu.memory_space<vmem>>, vector<8x128xf32>,
    return
  }
  func.func @transform_0(%arg0: i32) -> (i32, i32) {
    %c0_i32 = arith.constant 0 : i32
    %c0_i32_0 = arith.constant 0 : i32
    return %arg0, %c0_i32 : i32, i32
  }
  func.func @transform_1(%arg0: i32) -> (i32, i32) {
    %c0_i32 = arith.constant 0 : i32
    %c0_i32_0 = arith.constant 0 : i32
    %c0_i32_1 = arith.constant 0 : i32
    return %c0_i32, %c0_i32_0 : i32, i32
  }
  func.func @transform_2(%arg0: i32) -> (i32, i32) {
    %c0_i32 = arith.constant 0 : i32
    %c0_i32_0 = arith.constant 0 : i32
    %c0_i32_1 = arith.constant 0 : i32
    return %c0_i32, %c0_i32_0 : i32, i32
  }
  func.func @transform_3(%arg0: i32) -> (i32, i32) {
    %c0_i32 = arith.constant 0 : i32
    %c0_i32_0 = arith.constant 0 : i32
    %c0_i32_1 = arith.constant 0 : i32
    return %c0_i32, %c0_i32_0 : i32, i32
  }
  func.func @transform_4(%arg0: i32) -> (i32, i32) {
    %c0_i32 = arith.constant 0 : i32
    %c0_i32_0 = arith.constant 0 : i32
    %c0_i32_1 = arith.constant 0 : i32
    return %c0_i32, %c0_i32_0 : i32, i32
  }
  func.func @transform_5(%arg0: i32) -> (i32, i32) {
    %c0_i32 = arith.constant 0 : i32
    %c0_i32_0 = arith.constant 0 : i32
    %c0_i32_1 = arith.constant 0 : i32
    return %c0_i32, %c0_i32_0 : i32, i32
  }
  func.func @transform_6(%arg0: i32) -> (i32, i32) {
    %c0_i32 = arith.constant 0 : i32
    %c0_i32_0 = arith.constant 0 : i32
    %c0_i32_1 = arith.constant 0 : i32
    return %c0_i32, %c0_i32_0 : i32, i32
  }
  func.func @transform_7(%arg0: i32) -> (i32, i32) {
    %c0_i32 = arith.constant 0 : i32
    %c0_i32_0 = arith.constant 0 : i32
    return %arg0, %c0_i32 : i32, i32
  }
}

</mosaic_0001>

<llo_original>
// kernel: tpu_custom_call.1
$region0: #{tpu_custom_call.1}
  #allocation0 [shape = 'u32[]', space=smem, size = 0x4, offset = 0x4, fixed_abs, tag = 'smem constant byte address 0x4 - core index']
  #allocation1 [shape = 'u32[144,128]{1,0:T(1,128)}', space=vmem, size = 0x12000, scoped, tag = 'internal scratch']
  %s0 = inlined_call_operand.vmem [shape: f32[8,4], index: 0, kind: input, shape index: {}]
  %s1 = inlined_call_operand.vmem [shape: f32[2,64], index: 1, kind: input, shape index: {}]
  %s2 = inlined_call_operand.vmem [shape: f32[1,64], index: 2, kind: input, shape index: {}]
  %s3 = inlined_call_operand.vmem [shape: f32[1,64], index: 3, kind: input, shape index: {}]
  %s4 = inlined_call_operand.hbm [shape: f32[64,128], index: 4, kind: input, shape index: {}]
  %s5 = inlined_call_operand.vmem [shape: f32[1,128], index: 5, kind: input, shape index: {}]
  %s6 = inlined_call_operand.vmem [shape: f32[1,128], index: 6, kind: input, shape index: {}]
  %s7 = inlined_call_operand.hbm [shape: f32[8,256], index: 7, kind: output, shape index: {}]
  %s8 = sld [smem:[#allocation0]]
  $region42: #{tpu_custom_call.1} parent=0
    _
  %s10 = ssub.s32 1, %s8
  %s11 = scalar_select 0, %s10, %s8
  $region1: #{tpu_custom_call.1} parent=0
    #allocation2 [shape = 'u8[32768]{0}', space=vmem, size = 0x8000, scoped, tag = 'input window, operand 4, single buffered']
    #allocation3 [shape = 's32[1]{0}', space=sflag, size = 0x4, scoped, tag = 'scoped memory for tpu_custom_call.1']
    #allocation4 [shape = 's32[1]{0}', space=sflag, size = 0x4, scoped, tag = 'scoped memory for tpu_custom_call.1']
    #allocation5 [shape = 'u8[8192]{0}', space=vmem, size = 0x2000, scoped, tag = 'output window, operand 0, single buffered']
    %12 = vsyncpa [#allocation3], 0
    %13 = vsyncpa [#allocation4], 0
    // Predicated region
    $region2: #{tpu_custom_call.1} parent=1 // pred_check
      _
    $region3: #{tpu_custom_call.1} parent=1 // pred_check_branch
      %15 = sbr.rel (0) target = $region5
    $region4: #{tpu_custom_call.1} parent=1 // pred_region
      _
    $region5: #{tpu_custom_call.1} parent=1 // pred_fallthru
      _
    // Predicated region
    $region6: #{tpu_custom_call.1} parent=1 // pred_check
      _
    $region7: #{tpu_custom_call.1} parent=1 // pred_check_branch
      %17 = sbr.rel (0) target = $region9
    $region8: #{tpu_custom_call.1} parent=1 // pred_region
      _
    $region9: #{tpu_custom_call.1} parent=1 // pred_fallthru
      _
    // Predicated region
    $region10: #{tpu_custom_call.1} parent=1 // pred_check
      _
    $region11: #{tpu_custom_call.1} parent=1 // pred_check_branch
      %19 = sbr.rel (0) target = $region13
    $region12: #{tpu_custom_call.1} parent=1 // pred_region
      _
    $region13: #{tpu_custom_call.1} parent=1 // pred_fallthru
      _
    // Predicated region
    $region14: #{tpu_custom_call.1} parent=1 // pred_check
      _
    $region15: #{tpu_custom_call.1} parent=1 // pred_check_branch
      %21 = sbr.rel (0) target = $region17
    $region16: #{tpu_custom_call.1} parent=1 // pred_region
      _
    $region17: #{tpu_custom_call.1} parent=1 // pred_fallthru
      _
    // Predicated region
    $region18: #{tpu_custom_call.1} parent=1 // pred_check
      _
    $region19: #{tpu_custom_call.1} parent=1 // pred_check_branch
      %23 = sbr.rel (0) target = $region21
    $region20: #{tpu_custom_call.1} parent=1 // pred_region
      %s25 = ssub.s32 1024, 1024
      %26 = vsyncadd [#allocation3], %s25
      %s27 = sshll.u32 [#allocation2], 4
      %s28 = int_to_ptr.vmem [resolvable:$true] %s27
      %33 = dma.hbm_to_vmem [thread:$0]  %s4, 1024, %s28, [#allocation3], 128, 128, 8
    $region21: #{tpu_custom_call.1} parent=1 // pred_fallthru
      _
    // Predicated region
    $region22: #{tpu_custom_call.1} parent=1 // pred_check
      _
    $region23: #{tpu_custom_call.1} parent=1 // pred_check_branch
      %35 = sbr.rel (0) target = $region25
    $region24: #{tpu_custom_call.1} parent=1 // pred_region
      _
    $region25: #{tpu_custom_call.1} parent=1 // pred_fallthru
      _
    // Predicated region
    $region26: #{tpu_custom_call.1} parent=1 // pred_check
      _
    $region27: #{tpu_custom_call.1} parent=1 // pred_check_branch
      %37 = sbr.rel (0) target = $region29
    $region28: #{tpu_custom_call.1} parent=1 // pred_region
      _
    $region29: #{tpu_custom_call.1} parent=1 // pred_fallthru
      _
    // Predicated region
    $region30: #{tpu_custom_call.1} parent=1 // pred_check
      _
    $region31: #{tpu_custom_call.1} parent=1 // pred_check_branch
      %39 = sbr.rel (0) target = $region33
    $region32: #{tpu_custom_call.1} parent=1 // pred_region
      %40 = dma.done [#allocation3], 1024
    $region33: #{tpu_custom_call.1} parent=1 // pred_fallthru
      _
    %v41 = vld [vmem:[%s0] sm:$0xff]
    %v42 = vld [vmem:[%s1] sm:$0x3]
    %v43 = vld [vmem:[%s2] sm:$0x1]
    %v44 = vld [vmem:[%s3] sm:$0x1]
    %v45 = vld [vmem:[#allocation2] sm:$0xff]
    %v46 = vld [vmem:[#allocation2 + $0x8] sm:$0xff]
    %v47 = vld [vmem:[#allocation2 + $0x10] sm:$0xff]
    %v48 = vld [vmem:[#allocation2 + $0x18] sm:$0xff]
    %v49 = vld [vmem:[#allocation2 + $0x20] sm:$0xff]
    %v50 = vld [vmem:[#allocation2 + $0x28] sm:$0xff]
    %v51 = vld [vmem:[#allocation2 + $0x30] sm:$0xff]
    %v52 = vld [vmem:[#allocation2 + $0x38] sm:$0xff]
    %v53 = vld [vmem:[%s5] sm:$0x1]
    %v54 = vld [vmem:[%s6] sm:$0x1]
    %56 = vrot.lane.b32.xlu0 %v41, 126
    %v57 = vpop.permute.xlu0 %56
    %58 = vset.pattern.permute.xlu0 0
    %59 = vperm.xlu0 %58, %v41
    %v60 = vpop.permute.xlu0 %59
    %62 = vset.pattern.permute.xlu0 0
    %63 = vperm.xlu0 %62, %v57
    %v64 = vpop.permute.xlu0 %63
    %v66 = vlaneseq
    %v67 = vshrl.u32 %v66, 7
    %v68 = vsub.s32 0, %v67
    %v69 = vrot.slane %v42, %v68
    %v70 = vmul.f32 %v60, %v69
    %v71 = vmul.f32 %v64, %v69
    %72 = vset.pattern.permute.xlu0 1
    %73 = vperm.xlu0 %72, %v41
    %v74 = vpop.permute.xlu0 %73
    %76 = vset.pattern.permute.xlu0 1
    %77 = vperm.xlu0 %76, %v57
    %v78 = vpop.permute.xlu0 %77
    %v80 = vlaneseq
    %v81 = vshrl.u32 %v80, 7
    %v82 = vsub.s32 1, %v81
    %v83 = vrot.slane %v42, %v82
    %v84 = vmul.f32 %v74, %v83
    %v85 = vmul.f32 %v78, %v83
    %v86 = vadd.f32 %v70, %v84
    %v87 = vadd.f32 %v71, %v85
    %vm88 = vcmask 523264
    %v89 = vsel %vm88, %v86, 0.0
    %90 = vadd.xlane.f32.xlu0 %v89
    %v91 = vpop.xlane.xlu0 %90
    %v92 = vsel %vm88, %v87, 0.0
    %93 = vadd.xlane.f32.xlu0 %v92
    %v94 = vpop.xlane.xlu0 %93
    %v95 = vmul.f32 %v91, 0.015625
    %v96 = vmul.f32 %v94, 0.015625
    %v97 = vmul.f32 %v86, %v86
    %v98 = vmul.f32 %v87, %v87
    %v99 = vsel %vm88, %v97, 0.0
    %100 = vadd.xlane.f32.xlu0 %v99
    %v101 = vpop.xlane.xlu0 %100
    %v102 = vsel %vm88, %v98, 0.0
    %103 = vadd.xlane.f32.xlu0 %v102
    %v104 = vpop.xlane.xlu0 %103
    %v105 = vmul.f32 %v101, 0.015625
    %v106 = vmul.f32 %v104, 0.015625
    %v107 = vmul.f32 %v95, %v95
    %v108 = vmul.f32 %v96, %v96
    %v109 = vsub.f32 %v105, %v107
    %v110 = vsub.f32 %v106, %v108
    %v111 = vmax.f32 %v109, 0.0
    %v112 = vmax.f32 %v110, 0.0
    %v113 = vsub.f32 %v86, %v95
    %v114 = vsub.f32 %v87, %v96
    %v115 = vadd.f32 %v111, 1e-05
    %v116 = vadd.f32 %v112, 1e-05
    %v117 = vrsqrt.pop %v115
    %v118 = vrsqrt.pop %v116
    %v119 = vmul.f32 %v113, %v117
    %v120 = vmul.f32 %v114, %v118
    %v122 = vlaneseq
    %v123 = vshrl.u32 %v122, 7
    %v124 = vsub.s32 0, %v123
    %v125 = vrot.slane %v43, %v124
    %v127 = vmul.f32 %v119, %v125
    %v128 = vmul.f32 %v120, %v125
    %v130 = vlaneseq
    %v131 = vshrl.u32 %v130, 7
    %v132 = vsub.s32 0, %v131
    %v133 = vrot.slane %v44, %v132
    %v135 = vadd.f32 %v127, %v133
    %v136 = vadd.f32 %v128, %v133
    %v137 = vmax.f32 %v135, 0.0
    %v138 = vmax.f32 %v136, 0.0
    %v140 = vsel %vm88, %v137, 0
    %v143 = vsel %vm88, %v138, 0
    %145 = vmatprep.subr.mxu0 0.0
    %146 = vmatpush1.msra.mxu0 %v45
    %147 = vmatprep.subr.mxu0 0.0
    %148 = vmatpush1.msra.mxu0 %v46
    %149 = vmatprep.subr.mxu0 0.0
    %150 = vmatpush1.msra.mxu0 %v47
    %151 = vmatprep.subr.mxu0 0.0
    %152 = vmatpush1.msra.mxu0 %v48
    %153 = vmatprep.subr.mxu0 0.0
    %154 = vmatpush1.msra.mxu0 %v49
    %155 = vmatprep.subr.mxu0 0.0
    %156 = vmatpush1.msra.mxu0 %v50
    %157 = vmatprep.subr.mxu0 0.0
    %158 = vmatpush1.msra.mxu0 %v51
    %159 = vmatprep.subr.mxu0 0.0
    %160 = vmatpush1.msra.mxu0 %v52
    %161 = vmatprep.subr.mxu0 0.0
    %162 = vmatpush1.msra.mxu0 0.0
    %163 = vmatprep.subr.mxu0 0.0
    %164 = vmatpush1.msra.mxu0 0.0
    %165 = vmatprep.subr.mxu0 0.0
    %166 = vmatpush1.msra.mxu0 0.0
    %167 = vmatprep.subr.mxu0 0.0
    %168 = vmatpush1.msra.mxu0 0.0
    %169 = vmatprep.subr.mxu0 0.0
    %170 = vmatpush1.msra.mxu0 0.0
    %171 = vmatprep.subr.mxu0 0.0
    %172 = vmatpush1.msra.mxu0 0.0
    %173 = vmatprep.subr.mxu0 0.0
    %174 = vmatpush1.msra.mxu0 0.0
    %175 = vmatprep.subr.mxu0 0.0
    %176 = vmatpush1.msra.mxu0 0.0
    %177 = vmatprep.subr.mxu0 0.0
    %178 = vmatpush1.msra.mxu0 0.0
    %179 = vmatprep.subr.mxu0 0.0
    %180 = vmatpush1.msra.mxu0 0.0
    %181 = vmatprep.subr.mxu0 0.0
    %182 = vmatpush1.msra.mxu0 0.0
    %183 = vmatprep.subr.mxu0 0.0
    %184 = vmatpush1.msra.mxu0 0.0
    %185 = vmatprep.subr.mxu0 0.0
    %186 = vmatpush1.msra.mxu0 0.0
    %187 = vmatprep.subr.mxu0 0.0
    %188 = vmatpush1.msra.mxu0 0.0
    %189 = vmatprep.subr.mxu0 0.0
    %190 = vmatpush1.msra.mxu0 0.0
    %191 = vmatprep.subr.mxu0 0.0
    %192 = vmatpush1.msra.mxu0 0.0
    %193 = vmatprep.subr.mxu0 0.0
    %194 = vmatpush1.msra.mxu0 0.0
    %195 = vmatprep.subr.mxu0 0.0
    %196 = vmatpush1.msra.mxu0 0.0
    %197 = vmatprep.subr.mxu0 0.0
    %198 = vmatpush1.msra.mxu0 0.0
    %199 = vmatprep.subr.mxu0 0.0
    %200 = vmatpush1.msra.mxu0 0.0
    %201 = vmatprep.subr.mxu0 0.0
    %202 = vmatpush1.msra.mxu0 0.0
    %203 = vmatprep.subr.mxu0 0.0
    %204 = vmatpush1.msra.mxu0 0.0
    %205 = vmatprep.subr.mxu0 0.0
    %206 = vmatpush1.msra.mxu0 0.0
    %207 = vmatprep.subr.mxu0 0.0
    %208 = vmatpush1.msra.mxu0 0.0
    %209 = vmatprep.mubr.f32.mxu0 0.0
    %210 = vmatmul.mubr.f32.gmra.mrb[0].mxu0 %v140
    %v211 = vpop.f32.mrb[0].mxu0
    %v212 = vadd.f32 0.0, %v211
    %v213 = vpop.f32.mrb[0].mxu0
    %214 = vmatprep.mubr.f32.mxu0 0.0
    %215 = vmatmul.mubr.f32.gmra.mrb[0].mxu0 %v143
    %v216 = vpop.f32.mrb[0].mxu0
    %v217 = vadd.f32 0.0, %v216
    %v218 = vpop.f32.mrb[0].mxu0
    %219 = vdwg.mxu0
    %220 = vadd.xlane.f32.xlu0 %v212
    %v221 = vpop.xlane.xlu0 %220
    %222 = vadd.xlane.f32.xlu0 %v217
    %v223 = vpop.xlane.xlu0 %222
    %v224 = vmul.f32 %v221, 0.0078125
    %v225 = vmul.f32 %v223, 0.0078125
    %v226 = vmul.f32 %v212, %v212
    %v227 = vmul.f32 %v217, %v217
    %228 = vadd.xlane.f32.xlu0 %v226
    %v229 = vpop.xlane.xlu0 %228
    %230 = vadd.xlane.f32.xlu0 %v227
    %v231 = vpop.xlane.xlu0 %230
    %v232 = vmul.f32 %v229, 0.0078125
    %v233 = vmul.f32 %v231, 0.0078125
    %v234 = vmul.f32 %v224, %v224
    %v235 = vmul.f32 %v225, %v225
    %v236 = vsub.f32 %v232, %v234
    %v237 = vsub.f32 %v233, %v235
    %v238 = vmax.f32 %v236, 0.0
    %v239 = vmax.f32 %v237, 0.0
    %v240 = vsub.f32 %v212, %v224
    %v241 = vsub.f32 %v217, %v225
    %v242 = vadd.f32 %v238, 1e-05
    %v243 = vadd.f32 %v239, 1e-05
    %v244 = vrsqrt.pop %v242
    %v245 = vrsqrt.pop %v243
    %v246 = vmul.f32 %v240, %v244
    %v247 = vmul.f32 %v241, %v245
    %v249 = vlaneseq
    %v250 = vshrl.u32 %v249, 7
    %v251 = vsub.s32 0, %v250
    %v252 = vrot.slane %v53, %v251
    %v254 = vmul.f32 %v246, %v252
    %v255 = vmul.f32 %v247, %v252
    %v257 = vlaneseq
    %v258 = vshrl.u32 %v257, 7
    %v259 = vsub.s32 0, %v258
    %v260 = vrot.slane %v54, %v259
    %v262 = vadd.f32 %v254, %v260
    %v263 = vadd.f32 %v255, %v260
    %264 = vst [vmem:[#allocation5] sm:$0xff] %v262
    %265 = vst [vmem:[#allocation5 + $0x8] sm:$0xff] %v263
    // Predicated region
    $region34: #{tpu_custom_call.1} parent=1 // pred_check
      _
    $region35: #{tpu_custom_call.1} parent=1 // pred_check_branch
      %267 = sbr.rel (0) target = $region37
    $region36: #{tpu_custom_call.1} parent=1 // pred_region
      %s269 = ssub.s32 256, 256
      %270 = vsyncadd [#allocation4], %s269
      %s272 = sshll.u32 [#allocation5], 4
      %s273 = int_to_ptr.vmem [resolvable:$true] %s272
      %275 = dma.vmem_to_hbm [thread:$0]  %s273, 256, %s7, [#allocation4]
    $region37: #{tpu_custom_call.1} parent=1 // pred_fallthru
      _
    // Predicated region
    $region38: #{tpu_custom_call.1} parent=1 // pred_check
      _
    $region39: #{tpu_custom_call.1} parent=1 // pred_check_branch
      %277 = sbr.rel (0) target = $region41
    $region40: #{tpu_custom_call.1} parent=1 // pred_region
      %278 = dma.done [#allocation4], 256
    $region41: #{tpu_custom_call.1} parent=1 // pred_fallthru
      _
    %279 = vsyncpa [#allocation3], 1
    %280 = vsyncpa [#allocation4], 1

</llo_original>
